<compile_context>
chip_gen: v5e
topology: v5e:2x2
jax: 0.10.0
libtpu: 0.0.40
codegen_flags: <defaults>
</compile_context>

<pallas_src>
import functools

import jax
import jax.numpy as jnp
from jax import lax
from jax.experimental import pallas as pl
from jax.experimental.pallas import tpu as pltpu


def _round_up(x, m):
    return ((x + m - 1) // m) * m


def _tpu_defaults(C):
    """Per-generation (tile, vmem_limit_bytes, bf16_exp) defaults."""
    kind = ""
    try:
        kind = jax.devices()[0].device_kind.lower()
    except Exception:
        pass
    if "v6" in kind:
        t, vmem, bf16_exp = 1024, 64 * 1024 * 1024, True      # 128 MiB part
    elif "v7" in kind or "7x" in kind:
        t, vmem, bf16_exp = 512, 40 * 1024 * 1024, True       # 64 MiB part
    else:  # v5e / v5p / v4 / unknown: conservative
        t, vmem, bf16_exp = 256, 32 * 1024 * 1024, False
    # Crude VMEM guard for very wide channel counts (blocks scale ~ T*C).
    while t > 256 and t * max(C, 1) > 512 * 1024:
        t //= 2
    return t, vmem, bf16_exp


# ---------------------------------------------------------------------------
# Kernel 1: k / v projections (q is computed inside the attention kernel).
# ---------------------------------------------------------------------------
def _proj_kernel(x_ref, wk_ref, bk_ref, wv_ref, bv_ref, k_ref, v_ref):
    # x_ref block: (1, TS, C) f32; weights bf16; biases f32.
    x = x_ref[0].astype(jnp.bfloat16)                                  # (TS, C)
    k = jnp.dot(x, wk_ref[...], preferred_element_type=jnp.float32) + bk_ref[...]
    v = jnp.dot(x, wv_ref[...], preferred_element_type=jnp.float32) + bv_ref[...]
    k_ref[0] = k.astype(k_ref.dtype)
    v_ref[0] = v.astype(v_ref.dtype)


# ---------------------------------------------------------------------------
# Kernel 2: flash-style position attention with online softmax + residual.
# ---------------------------------------------------------------------------
def _flash_pam_kernel(wq_ref, bq_ref, x_ref, k_ref, v_ref, gamma_ref, o_ref,
                      q_sc, m_sc, l_sc, acc_sc, *,
                      hw, tk, need_mask, bf16_exp):
    ki = pl.program_id(2)

    @pl.when(ki == 0)
    def _():
        # q projection from the resident x tile (no q HBM round-trip).
        xb = x_ref[0].astype(jnp.bfloat16)                             # (TQ, C)
        q = jnp.dot(xb, wq_ref[...], preferred_element_type=jnp.float32) + bq_ref[...]
        q_sc[...] = q.astype(jnp.bfloat16)
        m_sc[...] = jnp.full_like(m_sc, -jnp.inf)
        l_sc[...] = jnp.zeros_like(l_sc)
        acc_sc[...] = jnp.zeros_like(acc_sc)

    q = q_sc[...]                                                      # (TQ, Cq) bf16
    k = k_ref[0]                                                       # (TK, Cq) bf16
    v = v_ref[0]                                                       # (TK, C)  bf16

    # Energy tile: contract the last dims directly (no explicit k.T / XLU copy).
    s = lax.dot_general(q, k, dimension_numbers=(((1,), (1,)), ((), ())),
                        preferred_element_type=jnp.float32)            # (TQ, TK)
    if need_mask:
        # Mask zero-padded key rows (every k tile is guaranteed to hold at
        # least one real column, so m_new stays finite).
        col = ki * tk + lax.broadcasted_iota(jnp.int32, s.shape, 1)
        s = jnp.where(col < hw, s, -jnp.inf)

    m_prev = m_sc[...]
    m_new = jnp.maximum(m_prev, jnp.max(s, axis=-1, keepdims=True))
    alpha = jnp.exp(m_prev - m_new)
    if bf16_exp:
        # v6e/v7x: EUP bf16 exp (~2x f32); upcast only for the f32 l-sum.
        p = jnp.exp((s - m_new).astype(jnp.bfloat16))
        p_sum = jnp.sum(p.astype(jnp.float32), axis=-1, keepdims=True)
    else:
        p32 = jnp.exp(s - m_new)
        p_sum = jnp.sum(p32, axis=-1, keepdims=True)
        p = p32.astype(jnp.bfloat16)
    l_sc[...] = alpha * l_sc[...] + p_sum
    acc_sc[...] = alpha * acc_sc[...] + jnp.dot(
        p, v, preferred_element_type=jnp.float32)
    m_sc[...] = m_new

    @pl.when(ki == pl.num_programs(2) - 1)
    def _():
        # Fold gamma into the per-row reciprocal scale (TQx1 multiply).
        scale = gamma_ref[0, 0] * pl.reciprocal(l_sc[...], approx=True)  # EUP slot
        o_ref[0] = acc_sc[...] * scale + x_ref[0]                        # residual f32


# ---------------------------------------------------------------------------
# Wrapper
# ---------------------------------------------------------------------------
def pam_module_forward(x_nchw, wq, bq, wk, bk, wv, bv, gamma, *,
                       tile=None, vmem_limit_bytes=None, bf16_exp=None):
    """x_nchw: (B, C, H, W). 1x1-conv weights wq/wk: (Cq, C), wv: (C, C)."""
    B, C, H, W = x_nchw.shape
    HW = H * W
    Cq = wq.shape[0]

    t_def, vmem_def, bf16_def = _tpu_defaults(C)
    T = tile if tile is not None else t_def
    vmem = vmem_limit_bytes if vmem_limit_bytes is not None else vmem_def
    use_bf16_exp = bf16_exp if bf16_exp is not None else bf16_def

    # One tile size for q/k and the projection pass; pad HW to a tile multiple
    # (padded key columns are masked in-kernel, padded query rows are sliced off).
    T = min(_round_up(T, 8), _round_up(HW, 8))
    P = _round_up(HW, T)
    nq = P // T
    nk = P // T

    # NCHW -> (B, HW, C), row-major over (H, W) to match torch's .view(B,-1,H*W).
    # TODO(synk): the wrapper transposes (here and at the end) are extra XLA HBM
    # passes; they could be folded into the kernels by reading NCHW with (1,C,T)
    # blocks and transposing the accumulator in-kernel on the XLU.
    x = jnp.transpose(x_nchw.reshape(B, C, HW), (0, 2, 1)).astype(jnp.float32)
    if P != HW:
        x = jnp.pad(x, ((0, 0), (0, P - HW), (0, 0)))

    # bf16 weights for the MXU, f32 biases. Cq is NOT lane-padded (full-dim
    # last-axis blocks are legal), which keeps the re-read k stream minimal.
    wq_t = wq.T.astype(jnp.bfloat16)                     # (C, Cq)
    wk_t = wk.T.astype(jnp.bfloat16)                     # (C, Cq)
    wv_t = wv.T.astype(jnp.bfloat16)                     # (C, C)
    bq_2d = bq.reshape(1, Cq).astype(jnp.float32)
    bk_2d = bk.reshape(1, Cq).astype(jnp.float32)
    bv_2d = bv.reshape(1, C).astype(jnp.float32)
    gamma_2d = jnp.asarray(gamma, jnp.float32).reshape(1, 1)

    # ---- pass 1: k / v projections ----------------------------------------
    # NOTE: weight/bias blocks have constant index_maps (resident operands); on
    # v7x they could be marked pipeline_mode=pl.Buffered(1) to reclaim their
    # double-buffer VMEM.
    proj_cost = pl.CostEstimate(
        flops=2 * B * P * C * (Cq + C),
        transcendentals=0,
        bytes_accessed=(B * P * C * 4 + (C * Cq + C * C) * 2
                        + B * P * (Cq + C) * 2),
    )
    k_hbm, v_hbm = pl.pallas_call(
        _proj_kernel,
        out_shape=(
            jax.ShapeDtypeStruct((B, P, Cq), jnp.bfloat16),
            jax.ShapeDtypeStruct((B, P, C), jnp.bfloat16),
        ),
        grid_spec=pltpu.PrefetchScalarGridSpec(
            num_scalar_prefetch=0,
            grid=(B, P // T),
            in_specs=[
                pl.BlockSpec((1, T, C), lambda b, s: (b, s, 0)),      # x
                pl.BlockSpec((C, Cq), lambda b, s: (0, 0)),           # Wk^T
                pl.BlockSpec((1, Cq), lambda b, s: (0, 0)),           # bk
                pl.BlockSpec((C, C), lambda b, s: (0, 0)),            # Wv^T
                pl.BlockSpec((1, C), lambda b, s: (0, 0)),            # bv
            ],
            out_specs=[
                pl.BlockSpec((1, T, Cq), lambda b, s: (b, s, 0)),     # k
                pl.BlockSpec((1, T, C), lambda b, s: (b, s, 0)),      # v
            ],
        ),
        compiler_params=pltpu.CompilerParams(
            dimension_semantics=("parallel", "parallel"),
            vmem_limit_bytes=min(vmem, 32 * 1024 * 1024)),
        cost_estimate=proj_cost,
    )(x, wk_t, bk_2d, wv_t, bv_2d)

    # ---- pass 2: flash attention + gamma * out + residual -------------------
    flash_kernel = functools.partial(
        _flash_pam_kernel, hw=HW, tk=T, need_mask=(P != HW), bf16_exp=use_bf16_exp)
    flash_cost = pl.CostEstimate(
        flops=2 * B * P * P * (Cq + C) + 2 * B * P * C * Cq,
        transcendentals=B * P * P,
        bytes_accessed=(B * P * C * 4                        # x (q-proj + residual)
                        + B * nq * P * (Cq + C) * 2          # k, v re-read per q tile
                        + B * P * C * 4),                    # out write
    )
    out = pl.pallas_call(
        flash_kernel,
        out_shape=jax.ShapeDtypeStruct((B, P, C), jnp.float32),
        grid_spec=pltpu.PrefetchScalarGridSpec(
            num_scalar_prefetch=0,
            grid=(B, nq, nk),
            in_specs=[
                pl.BlockSpec((C, Cq), lambda b, qi, ki: (0, 0)),         # Wq^T (resident)
                pl.BlockSpec((1, Cq), lambda b, qi, ki: (0, 0)),         # bq   (resident)
                pl.BlockSpec((1, T, C), lambda b, qi, ki: (b, qi, 0)),   # x tile
                pl.BlockSpec((1, T, Cq), lambda b, qi, ki: (b, ki, 0)),  # k tile
                pl.BlockSpec((1, T, C), lambda b, qi, ki: (b, ki, 0)),   # v tile
                pl.BlockSpec(memory_space=pltpu.MemorySpace.SMEM),       # gamma scalar
            ],
            out_specs=pl.BlockSpec((1, T, C), lambda b, qi, ki: (b, qi, 0)),
            scratch_shapes=[
                pltpu.VMEM((T, Cq), jnp.bfloat16),   # q tile (computed at ki == 0)
                pltpu.VMEM((T, 1), jnp.float32),     # running max m
                pltpu.VMEM((T, 1), jnp.float32),     # running sum l
                pltpu.VMEM((T, C), jnp.float32),     # output accumulator
            ],
        ),
        compiler_params=pltpu.CompilerParams(
            dimension_semantics=("parallel", "parallel", "arbitrary"),
            vmem_limit_bytes=vmem),
        cost_estimate=flash_cost,
    )(wq_t, bq_2d, x, k_hbm, v_hbm, gamma_2d)

    out = out[:, :HW, :]                                   # drop padded rows
    return jnp.transpose(out, (0, 2, 1)).reshape(B, C, H, W)


def pam_reference(x_nchw, wq, bq, wk, bk, wv, bv, gamma):
    """Pure-JAX f32 reference mirroring the PyTorch forward exactly."""
    B, C, H, W = x_nchw.shape
    HW = H * W
    x = x_nchw.astype(jnp.float32)
    conv = lambda w, b: jnp.einsum('bchw,oc->bohw', x, w) + b[None, :, None, None]
    proj_query = conv(wq, bq).reshape(B, -1, HW).transpose(0, 2, 1)   # (B, HW, Cq)
    proj_key = conv(wk, bk).reshape(B, -1, HW)                        # (B, Cq, HW)
    energy = jnp.einsum('bik,bkj->bij', proj_query, proj_key)         # (B, HW, HW)
    attention = jax.nn.softmax(energy, axis=-1)
    proj_value = conv(wv, bv).reshape(B, -1, HW)                      # (B, C, HW)
    out = jnp.einsum('bci,bji->bcj', proj_value, attention)           # (B, C, HW)
    out = out.reshape(B, C, H, W)
    return gamma * out + x


if __name__ == "__main__":
    # Small shapes consistent with the module: in_dim must be >= 8 (in_dim // 8 >= 1).
    B, C, H, W = 2, 32, 8, 8
    Cq = C // 8

    key = jax.random.PRNGKey(0)
    kx, kq, kbq, kk, kbk, kv, kbv = jax.random.split(key, 7)

    x = jax.random.normal(kx, (B, C, H, W), jnp.float32)
    # Deterministic synthetic parameter init (Conv2d 1x1 weights squeezed to 2-D).
    wq = 0.1 * jax.random.normal(kq, (Cq, C), jnp.float32)
    bq = 0.1 * jax.random.normal(kbq, (Cq,), jnp.float32)
    wk = 0.1 * jax.random.normal(kk, (Cq, C), jnp.float32)
    bk = 0.1 * jax.random.normal(kbk, (Cq,), jnp.float32)
    wv = 0.1 * jax.random.normal(kv, (C, C), jnp.float32)
    bv = 0.1 * jax.random.normal(kbv, (C,), jnp.float32)
    # PyTorch inits gamma = 0; use a nonzero deterministic value so the
    # attention path actually contributes to the output being checked.
    gamma = jnp.float32(0.5)

    out = pam_module_forward(x, wq, bq, wk, bk, wv, bv, gamma)
    out = jax.block_until_ready(out)

    ref = pam_reference(x, wq, bq, wk, bk, wv, bv, gamma)
    assert out.shape == (B, C, H, W)
    # bf16 MXU operands (+ bf16 exp on v6e/v7x) + approx reciprocal => loose f32 tol.
    assert jnp.allclose(out, ref, atol=2e-2, rtol=2e-2), "mismatch vs reference"

    print("KERNEL_OK")
</pallas_src>

<mosaic_0001>
module attributes {stable_mosaic.version = 11 : i64} {
  func.func @_proj_kernel(%arg0: i32, %arg1: i32, %arg2: memref<1x64x32xf32, #tpu.memory_space<vmem>>, %arg3: memref<32x4xbf16, #tpu.memory_space<vmem>>, %arg4: memref<1x4xf32, #tpu.memory_space<vmem>>, %arg5: memref<32x32xbf16, #tpu.memory_space<vmem>>, %arg6: memref<1x32xf32, #tpu.memory_space<vmem>>, %arg7: memref<1x64x4xbf16, #tpu.memory_space<vmem>>, %arg8: memref<1x64x32xbf16, #tpu.memory_space<vmem>>) attributes {dimension_semantics = [#tpu.dimension_semantics<parallel>, #tpu.dimension_semantics<parallel>], iteration_bounds = array<i64: 2, 1>, scalar_prefetch = 0 : i64, scratch_operands = 0 : i64, tpu.core_type = #tpu.core_type<tc>, window_params = [{transform_indices = @transform_0, window_bounds = array<i64: 1, 64, 32>}, {pipeline_mode = #tpu.pipeline_mode<synchronous>, transform_indices = @transform_1, window_bounds = array<i64: 32, 4>}, {pipeline_mode = #tpu.pipeline_mode<synchronous>, transform_indices = @transform_2, window_bounds = array<i64: 1, 4>}, {pipeline_mode = #tpu.pipeline_mode<synchronous>, transform_indices = @transform_3, window_bounds = array<i64: 32, 32>}, {pipeline_mode = #tpu.pipeline_mode<synchronous>, transform_indices = @transform_4, window_bounds = array<i64: 1, 32>}, {transform_indices = @transform_5, window_bounds = array<i64: 1, 64, 4>}, {transform_indices = @transform_6, window_bounds = array<i64: 1, 64, 32>}]} {
    %c0 = arith.constant 0 : index
    %c0_0 = arith.constant 0 : index
    %c0_1 = arith.constant 0 : index
    %0 = vector.load %arg2[%c0, %c0_0, %c0_1] : memref<1x64x32xf32, #tpu.memory_space<vmem>>, vector<1x64x32xf32>
    %1 = vector.shape_cast %0 : vector<1x64x32xf32> to vector<64x32xf32>
    %2 = arith.truncf %1 : vector<64x32xf32> to vector<64x32xbf16>
    %c0_2 = arith.constant 0 : index
    %c0_3 = arith.constant 0 : index
    %3 = vector.load %arg3[%c0_2, %c0_3] : memref<32x4xbf16, #tpu.memory_space<vmem>>, vector<32x4xbf16>
    %cst = arith.constant dense<0.000000e+00> : vector<64x4xf32>
    %4 = tpu.matmul %2, %3, %cst {dimension_numbers = #tpu.dot_dimension_numbers<[1], [0], [0], [1], [0, 0, 1, 1], [], []>} : vector<64x32xbf16>, vector<32x4xbf16>, vector<64x4xf32> -> vector<64x4xf32>
    %c0_4 = arith.constant 0 : index
    %c0_5 = arith.constant 0 : index
    %5 = vector.load %arg4[%c0_4, %c0_5] : memref<1x4xf32, #tpu.memory_space<vmem>>, vector<1x4xf32>
    %6 = vector.broadcast %5 : vector<1x4xf32> to vector<64x4xf32>
    %7 = arith.addf %4, %6 : vector<64x4xf32>
    %c0_6 = arith.constant 0 : index
    %c0_7 = arith.constant 0 : index
    %8 = vector.load %arg5[%c0_6, %c0_7] : memref<32x32xbf16, #tpu.memory_space<vmem>>, vector<32x32xbf16>
    %cst_8 = arith.constant dense<0.000000e+00> : vector<64x32xf32>
    %9 = tpu.matmul %2, %8, %cst_8 {dimension_numbers = #tpu.dot_dimension_numbers<[1], [0], [0], [1], [0, 0, 1, 1], [], []>} : vector<64x32xbf16>, vector<32x32xbf16>, vector<64x32xf32> -> vector<64x32xf32>
    %c0_9 = arith.constant 0 : index
    %c0_10 = arith.constant 0 : index
    %10 = vector.load %arg6[%c0_9, %c0_10] : memref<1x32xf32, #tpu.memory_space<vmem>>, vector<1x32xf32>
    %11 = vector.broadcast %10 : vector<1x32xf32> to vector<64x32xf32>
    %12 = arith.addf %9, %11 : vector<64x32xf32>
    %13 = arith.truncf %7 : vector<64x4xf32> to vector<64x4xbf16>
    %c0_11 = arith.constant 0 : index
    %c0_12 = arith.constant 0 : index
    %c0_13 = arith.constant 0 : index
    %14 = vector.load %arg7[%c0_11, %c0_12, %c0_13] : memref<1x64x4xbf16, #tpu.memory_space<vmem>>, vector<1x64x4xbf16>
    %15 = vector.shape_cast %14 : vector<1x64x4xbf16> to vector<64x4xbf16>
    %16 = vector.shape_cast %13 : vector<64x4xbf16> to vector<1x64x4xbf16>
    tpu.vector_store %arg7[%c0_11, %c0_12, %c0_13], %16 {strides = array<i32>} : memref<1x64x4xbf16, #tpu.memory_space<vmem>>, vector<1x64x4xbf16>,
    %17 = arith.truncf %12 : vector<64x32xf32> to vector<64x32xbf16>
    %c0_14 = arith.constant 0 : index
    %c0_15 = arith.constant 0 : index
    %c0_16 = arith.constant 0 : index
    %18 = vector.load %arg8[%c0_14, %c0_15, %c0_16] : memref<1x64x32xbf16, #tpu.memory_space<vmem>>, vector<1x64x32xbf16>
    %19 = vector.shape_cast %18 : vector<1x64x32xbf16> to vector<64x32xbf16>
    %20 = vector.shape_cast %17 : vector<64x32xbf16> to vector<1x64x32xbf16>
    tpu.vector_store %arg8[%c0_14, %c0_15, %c0_16], %20 {strides = array<i32>} : memref<1x64x32xbf16, #tpu.memory_space<vmem>>, vector<1x64x32xbf16>,
    return
  }
  func.func @transform_0(%arg0: i32, %arg1: i32) -> (i32, i32, i32) {
    %c0_i32 = arith.constant 0 : i32
    %c0_i32_0 = arith.constant 0 : i32
    return %arg0, %arg1, %c0_i32 : i32, i32, i32
  }
  func.func @transform_1(%arg0: i32, %arg1: i32) -> (i32, i32) {
    %c0_i32 = arith.constant 0 : i32
    %c0_i32_0 = arith.constant 0 : i32
    %c0_i32_1 = arith.constant 0 : i32
    return %c0_i32, %c0_i32_0 : i32, i32
  }
  func.func @transform_2(%arg0: i32, %arg1: i32) -> (i32, i32) {
    %c0_i32 = arith.constant 0 : i32
    %c0_i32_0 = arith.constant 0 : i32
    %c0_i32_1 = arith.constant 0 : i32
    return %c0_i32, %c0_i32_0 : i32, i32
  }
  func.func @transform_3(%arg0: i32, %arg1: i32) -> (i32, i32) {
    %c0_i32 = arith.constant 0 : i32
    %c0_i32_0 = arith.constant 0 : i32
    %c0_i32_1 = arith.constant 0 : i32
    return %c0_i32, %c0_i32_0 : i32, i32
  }
  func.func @transform_4(%arg0: i32, %arg1: i32) -> (i32, i32) {
    %c0_i32 = arith.constant 0 : i32
    %c0_i32_0 = arith.constant 0 : i32
    %c0_i32_1 = arith.constant 0 : i32
    return %c0_i32, %c0_i32_0 : i32, i32
  }
  func.func @transform_5(%arg0: i32, %arg1: i32) -> (i32, i32, i32) {
    %c0_i32 = arith.constant 0 : i32
    %c0_i32_0 = arith.constant 0 : i32
    return %arg0, %arg1, %c0_i32 : i32, i32, i32
  }
  func.func @transform_6(%arg0: i32, %arg1: i32) -> (i32, i32, i32) {
    %c0_i32 = arith.constant 0 : i32
    %c0_i32_0 = arith.constant 0 : i32
    return %arg0, %arg1, %c0_i32 : i32, i32, i32
  }
}

</mosaic_0001>

<llo_original>
// kernel: tpu_custom_call.1
$region0: #{tpu_custom_call.1}
  #allocation0 [shape = 'u32[]', space=smem, size = 0x4, offset = 0x4, fixed_abs, tag = 'smem constant byte address 0x4 - core index']
  #allocation1 [shape = 'u32[72,128]{1,0:T(1,128)}', space=vmem, size = 0x9000, scoped, tag = 'internal scratch']
  %s0 = inlined_call_operand.vmem [shape: f32[2,64,32], index: 0, kind: input, shape index: {}]
  %s1 = inlined_call_operand.vmem [shape: bf16[32,4], index: 1, kind: input, shape index: {}]
  %s2 = inlined_call_operand.vmem [shape: f32[1,4], index: 2, kind: input, shape index: {}]
  %s3 = inlined_call_operand.vmem [shape: bf16[32,32], index: 3, kind: input, shape index: {}]
  %s4 = inlined_call_operand.vmem [shape: f32[1,32], index: 4, kind: input, shape index: {}]
  %s5 = inlined_call_operand.vmem [shape: bf16[2,64,4], index: 5, kind: output, shape index: {0}]
  %s6 = inlined_call_operand.vmem [shape: bf16[2,64,32], index: 6, kind: output, shape index: {1}]
  %7 = xla_tuple %s5, %s6
  %s8 = sld [smem:[#allocation0]]
  $region61: #{tpu_custom_call.1} parent=0
    _
  %s10 = ssub.s32 1, %s8
  %s11 = scalar_select 0, %s10, %s8
  loop: start=0, step=1, limit=4
  $region2: #{tpu_custom_call.1} parent=0 // loop_pre_header
    _
  $region3: #{tpu_custom_call.1} parent=0 // loop_header
    %s13 = sphi 0, %s17
    %p14 = scmp.ge.s32.totalorder %s13, 4
    %s20 = sphi 0, %s32
    %s21 = sphi 0, %s28
    %s22 = sphi 0, %s20
    %s23 = sphi 0, %s21
    %s24 = sphi 0, %s22
    %s25 = sphi 0, %s23
    %s37 = sphi 0, %s39
    %s40 = sphi 0, %s37
    %s41 = sphi 0, %s40
    %s57 = sphi 0, %s41
    %s61 = sphi 0, %s61
    %s63 = sphi 0, %s61
    %s64 = sphi 0, %s63
    %s78 = sphi 0, %s64
    %s82 = sphi 0, %s82
    %s84 = sphi 0, %s82
    %s85 = sphi 0, %s84
    %s99 = sphi 0, %s85
    %s103 = sphi 0, %s103
    %s105 = sphi 0, %s103
    %s106 = sphi 0, %s105
    %s120 = sphi 0, %s106
    %s124 = sphi 0, %s124
    %s126 = sphi 0, %s124
    %s127 = sphi 0, %s126
    %s141 = sphi 0, %s127
    %s149 = sphi 0, %s151
    %s152 = sphi 0, %s149
    %s153 = sphi 0, %s152
    %s169 = sphi 0, %s153
    %s177 = sphi 0, %s179
    %s180 = sphi 0, %s177
    %s181 = sphi 0, %s180
    %s197 = sphi 0, %s181
  $region4: #{tpu_custom_call.1} parent=0 // loop_header_branch
    %16 = sbr.rel (%p14) target = $region8
  $region5: #{tpu_custom_call.1} parent=0 // loop_body
    %s18 = ssub.s32 %s13, 1
    %s19 = ssub.s32 %s13, 2
    %s26 = sadd.s32 1, %s21
    %p27 = scmp.ge.s32.totalorder %s26, 1
    %s28 = scalar_select %p27, 0, %s26
    %s29 = sadd.s32 1, %s20
    %s30 = scalar_select %p27, %s29, %s20
    %p31 = scmp.ge.s32.totalorder %s30, 2
    %s32 = scalar_select %p31, 0, %s30
    %s33 = ssub.s32 %s20, %s32
    %s34 = ssub.s32 %s21, %s28
    %s35 = sor.u32 %s33, %s34
    %p36 = scmp.eq.s32.totalorder %s35, 0
    %s38 = sadd.s32 %s37, 1
    %s39 = scalar_select %p36, %s37, %s38
    %p42 = pneg %p36
    %p43 = scmp.eq.s32.totalorder %s13, 1
    %p44 = por %p42, %p43
    %p45 = scmp.ne.s32.totalorder %s37, %s40
    %p46 = scmp.eq.s32.totalorder %s13, 0
    %p47 = por %p45, %p46
    %p48 = scmp.ne.s32.totalorder %s37, %s40
    %p49 = scmp.eq.s32.totalorder %s18, 1
    %p50 = por %p48, %p49
    %p51 = scmp.ne.s32.totalorder %s40, %s41
    %p52 = scmp.eq.s32.totalorder %s18, 0
    %p53 = por %p51, %p52
    %p54 = scmp.ne.s32.totalorder %s40, %s41
    %p55 = scmp.eq.s32.totalorder %s19, 1
    %p56 = por %p54, %p55
    %p58 = scmp.ne.s32.totalorder %s41, %s57
    %p59 = scmp.eq.s32.totalorder %s19, 0
    %p60 = por %p58, %p59
    %s62 = sadd.s32 %s61, 1
    %p65 = scmp.eq.s32.totalorder %s13, 1
    %p66 = scmp.ne.s32.totalorder %s61, %s63
    %p67 = scmp.eq.s32.totalorder %s13, 0
    %p68 = por %p66, %p67
    %p69 = scmp.ne.s32.totalorder %s61, %s63
    %p70 = scmp.eq.s32.totalorder %s18, 1
    %p71 = por %p69, %p70
    %p72 = scmp.ne.s32.totalorder %s63, %s64
    %p73 = scmp.eq.s32.totalorder %s18, 0
    %p74 = por %p72, %p73
    %p75 = scmp.ne.s32.totalorder %s63, %s64
    %p76 = scmp.eq.s32.totalorder %s19, 1
    %p77 = por %p75, %p76
    %p79 = scmp.ne.s32.totalorder %s64, %s78
    %p80 = scmp.eq.s32.totalorder %s19, 0
    %p81 = por %p79, %p80
    %s83 = sadd.s32 %s82, 1
    %p86 = scmp.eq.s32.totalorder %s13, 1
    %p87 = scmp.ne.s32.totalorder %s82, %s84
    %p88 = scmp.eq.s32.totalorder %s13, 0
    %p89 = por %p87, %p88
    %p90 = scmp.ne.s32.totalorder %s82, %s84
    %p91 = scmp.eq.s32.totalorder %s18, 1
    %p92 = por %p90, %p91
    %p93 = scmp.ne.s32.totalorder %s84, %s85
    %p94 = scmp.eq.s32.totalorder %s18, 0
    %p95 = por %p93, %p94
    %p96 = scmp.ne.s32.totalorder %s84, %s85
    %p97 = scmp.eq.s32.totalorder %s19, 1
    %p98 = por %p96, %p97
    %p100 = scmp.ne.s32.totalorder %s85, %s99
    %p101 = scmp.eq.s32.totalorder %s19, 0
    %p102 = por %p100, %p101
    %s104 = sadd.s32 %s103, 1
    %p107 = scmp.eq.s32.totalorder %s13, 1
    %p108 = scmp.ne.s32.totalorder %s103, %s105
    %p109 = scmp.eq.s32.totalorder %s13, 0
    %p110 = por %p108, %p109
    %p111 = scmp.ne.s32.totalorder %s103, %s105
    %p112 = scmp.eq.s32.totalorder %s18, 1
    %p113 = por %p111, %p112
    %p114 = scmp.ne.s32.totalorder %s105, %s106
    %p115 = scmp.eq.s32.totalorder %s18, 0
    %p116 = por %p114, %p115
    %p117 = scmp.ne.s32.totalorder %s105, %s106
    %p118 = scmp.eq.s32.totalorder %s19, 1
    %p119 = por %p117, %p118
    %p121 = scmp.ne.s32.totalorder %s106, %s120
    %p122 = scmp.eq.s32.totalorder %s19, 0
    %p123 = por %p121, %p122
    %s125 = sadd.s32 %s124, 1
    %p128 = scmp.eq.s32.totalorder %s13, 1
    %p129 = scmp.ne.s32.totalorder %s124, %s126
    %p130 = scmp.eq.s32.totalorder %s13, 0
    %p131 = por %p129, %p130
    %p132 = scmp.ne.s32.totalorder %s124, %s126
    %p133 = scmp.eq.s32.totalorder %s18, 1
    %p134 = por %p132, %p133
    %p135 = scmp.ne.s32.totalorder %s126, %s127
    %p136 = scmp.eq.s32.totalorder %s18, 0
    %p137 = por %p135, %p136
    %p138 = scmp.ne.s32.totalorder %s126, %s127
    %p139 = scmp.eq.s32.totalorder %s19, 1
    %p140 = por %p138, %p139
    %p142 = scmp.ne.s32.totalorder %s127, %s141
    %p143 = scmp.eq.s32.totalorder %s19, 0
    %p144 = por %p142, %p143
    %s145 = ssub.s32 %s20, %s32
    %s146 = ssub.s32 %s21, %s28
    %s147 = sor.u32 %s145, %s146
    %p148 = scmp.eq.s32.totalorder %s147, 0
    %s150 = sadd.s32 %s149, 1
    %s151 = scalar_select %p148, %s149, %s150
    %p154 = pneg %p148
    %p155 = scmp.eq.s32.totalorder %s13, 1
    %p156 = por %p154, %p155
    %p157 = scmp.ne.s32.totalorder %s149, %s152
    %p158 = scmp.eq.s32.totalorder %s13, 0
    %p159 = por %p157, %p158
    %p160 = scmp.ne.s32.totalorder %s149, %s152
    %p161 = scmp.eq.s32.totalorder %s18, 1
    %p162 = por %p160, %p161
    %p163 = scmp.ne.s32.totalorder %s152, %s153
    %p164 = scmp.eq.s32.totalorder %s18, 0
    %p165 = por %p163, %p164
    %p166 = scmp.ne.s32.totalorder %s152, %s153
    %p167 = scmp.eq.s32.totalorder %s19, 1
    %p168 = por %p166, %p167
    %p170 = scmp.ne.s32.totalorder %s153, %s169
    %p171 = scmp.eq.s32.totalorder %s19, 0
    %p172 = por %p170, %p171
    %s173 = ssub.s32 %s20, %s32
    %s174 = ssub.s32 %s21, %s28
    %s175 = sor.u32 %s173, %s174
    %p176 = scmp.eq.s32.totalorder %s175, 0
    %s178 = sadd.s32 %s177, 1
    %s179 = scalar_select %p176, %s177, %s178
    %p182 = pneg %p176
    %p183 = scmp.eq.s32.totalorder %s13, 1
    %p184 = por %p182, %p183
    %p185 = scmp.ne.s32.totalorder %s177, %s180
    %p186 = scmp.eq.s32.totalorder %s13, 0
    %p187 = por %p185, %p186
    %p188 = scmp.ne.s32.totalorder %s177, %s180
    %p189 = scmp.eq.s32.totalorder %s18, 1
    %p190 = por %p188, %p189
    %p191 = scmp.ne.s32.totalorder %s180, %s181
    %p192 = scmp.eq.s32.totalorder %s18, 0
    %p193 = por %p191, %p192
    %p194 = scmp.ne.s32.totalorder %s180, %s181
    %p195 = scmp.eq.s32.totalorder %s19, 1
    %p196 = por %p194, %p195
    %p198 = scmp.ne.s32.totalorder %s181, %s197
    %p199 = scmp.eq.s32.totalorder %s19, 0
    %p200 = por %p198, %p199
    %p201 = scmp.le.s32.totalorder 1, %s13
    %p202 = scmp.lt.s32.totalorder %s13, 3
    %p203 = pnand %p201, %p202
    %p204 = pneg %p203
    // Predicated region
    $region9: #{tpu_custom_call.1} parent=5 // pred_check
      _
    $region10: #{tpu_custom_call.1} parent=5 // pred_check_branch
      %206 = sbr.rel (%p203) target = $region12
    $region11: #{tpu_custom_call.1} parent=5 // pred_region
      %s207 = ssub.s32 %s13, 1
      // Predicated region
      $region13: #{tpu_custom_call.1} parent=11 // pred_check
        %p208 = pneg %p74
      $region14: #{tpu_custom_call.1} parent=11 // pred_check_branch
        %210 = sbr.rel (%p208) target = $region16
      $region15: #{tpu_custom_call.1} parent=11 // pred_region
        _
      $region16: #{tpu_custom_call.1} parent=11 // pred_fallthru
        _
      // Predicated region
      $region17: #{tpu_custom_call.1} parent=11 // pred_check
        %p211 = pneg %p95
      $region18: #{tpu_custom_call.1} parent=11 // pred_check_branch
        %213 = sbr.rel (%p211) target = $region20
      $region19: #{tpu_custom_call.1} parent=11 // pred_region
        _
      $region20: #{tpu_custom_call.1} parent=11 // pred_fallthru
        _
      // Predicated region
      $region21: #{tpu_custom_call.1} parent=11 // pred_check
        %p214 = pneg %p116
      $region22: #{tpu_custom_call.1} parent=11 // pred_check_branch
        %216 = sbr.rel (%p214) target = $region24
      $region23: #{tpu_custom_call.1} parent=11 // pred_region
        _
      $region24: #{tpu_custom_call.1} parent=11 // pred_fallthru
        _
      // Predicated region
      $region25: #{tpu_custom_call.1} parent=11 // pred_check
        %p217 = pneg %p137
      $region26: #{tpu_custom_call.1} parent=11 // pred_check_branch
        %219 = sbr.rel (%p217) target = $region28
      $region27: #{tpu_custom_call.1} parent=11 // pred_region
        _
      $region28: #{tpu_custom_call.1} parent=11 // pred_fallthru
        _
    $region12: #{tpu_custom_call.1} parent=5 // pred_fallthru
      _
    %p220 = scmp.lt.s32.totalorder %s13, 2
    // Predicated region
    $region29: #{tpu_custom_call.1} parent=5 // pred_check
      %p221 = pneg %p220
    $region30: #{tpu_custom_call.1} parent=5 // pred_check_branch
      %223 = sbr.rel (%p221) target = $region32
    $region31: #{tpu_custom_call.1} parent=5 // pred_region
      // Predicated region
      $region33: #{tpu_custom_call.1} parent=31 // pred_check
        %p224 = pneg %p47
      $region34: #{tpu_custom_call.1} parent=31 // pred_check_branch
        %226 = sbr.rel (%p224) target = $region36
      $region35: #{tpu_custom_call.1} parent=31 // pred_region
        %s227 = smul.u32 8, %s21
        %p228 = scmp.lt.s32.totalorder %s20, 1
        %s229 = scalar_select %p228, %s20, 1
        %p230 = scmp.lt.s32.totalorder %s227, 7
        %s231 = scalar_select %p230, %s227, 7
        %s232 = smul.addr %s229, 8
        %s233 = sadd.s32 %s231, %s232
        %s234 = smul.addr %s233, 8
        %s235 = scalar_lea.vmem %s0, %s234
        %s236 = smul.u32 8, %s21
      $region36: #{tpu_custom_call.1} parent=31 // pred_fallthru
        _
    $region32: #{tpu_custom_call.1} parent=5 // pred_fallthru
      _
    %p237 = scmp.le.s32.totalorder 1, %s13
    %p238 = scmp.lt.s32.totalorder %s13, 3
    %p239 = pnand %p237, %p238
    %p240 = pneg %p239
    // Predicated region
    $region37: #{tpu_custom_call.1} parent=5 // pred_check
      _
    $region38: #{tpu_custom_call.1} parent=5 // pred_check_branch
      %242 = sbr.rel (%p239) target = $region40
    $region39: #{tpu_custom_call.1} parent=5 // pred_region
      %s243 = ssub.s32 %s13, 1
      %s244 = smul.u32 8, %s23
      %p245 = scmp.lt.s32.totalorder %s22, 1
      %s246 = scalar_select %p245, %s22, 1
      %p247 = scmp.lt.s32.totalorder %s244, 7
      %s248 = scalar_select %p247, %s244, 7
      %s249 = smul.addr %s246, 8
      %s250 = sadd.s32 %s248, %s249
      %s251 = smul.addr %s250, 8
      %s252 = scalar_lea.vmem %s0, %s251
      %p253 = pneg %p53
      %p254 = pneg %p50
      %p255 = pneg %p74
      %p256 = pneg %p71
      %p257 = pneg %p95
      %p258 = pneg %p92
      %p259 = pneg %p116
      %p260 = pneg %p113
      %p261 = pneg %p137
      %p262 = pneg %p134
      %p263 = pneg %p165
      %p264 = pneg %p162
      %s265 = smul.u32 8, %s23
      %p266 = scmp.lt.s32.totalorder %s22, 1
      %s267 = scalar_select %p266, %s22, 1
      %p268 = scmp.lt.s32.totalorder %s265, 7
      %s269 = scalar_select %p268, %s265, 7
      %s270 = smul.addr %s267, 8
      %s271 = sadd.s32 %s269, %s270
      %s272 = smul.addr %s271, 4
      %s273 = scalar_lea.vmem %s5, %s272
      %p274 = pneg %p193
      %p275 = pneg %p190
      %s276 = smul.u32 8, %s23
      %p277 = scmp.lt.s32.totalorder %s22, 1
      %s278 = scalar_select %p277, %s22, 1
      %p279 = scmp.lt.s32.totalorder %s276, 7
      %s280 = scalar_select %p279, %s276, 7
      %s281 = smul.addr %s278, 8
      %s282 = sadd.s32 %s280, %s281
      %s283 = smul.addr %s282, 4
      %s284 = scalar_lea.vmem %s6, %s283
      %s285 = smul.u32 8, %s23
      %p286 = scmp.lt.s32.totalorder %s22, 1
      %s287 = scalar_select %p286, %s22, 1
      %p288 = scmp.lt.s32.totalorder %s285, 7
      %s289 = scalar_select %p288, %s285, 7
      %s290 = smul.addr %s287, 8
      %s291 = sadd.s32 %s289, %s290
      %s292 = smul.addr %s291, 8
      %s293 = scalar_lea.vmem %s0, %s292
      %s294 = smul.u32 8, %s23
      %s295 = smul.u32 8, %s23
      %p296 = scmp.lt.s32.totalorder %s22, 1
      %s297 = scalar_select %p296, %s22, 1
      %p298 = scmp.lt.s32.totalorder %s295, 7
      %s299 = scalar_select %p298, %s295, 7
      %s300 = smul.addr %s297, 8
      %s301 = sadd.s32 %s299, %s300
      %s302 = smul.addr %s301, 4
      %s303 = scalar_lea.vmem %s5, %s302
      %s304 = smul.u32 8, %s23
      %s305 = smul.u32 8, %s23
      %p306 = scmp.lt.s32.totalorder %s22, 1
      %s307 = scalar_select %p306, %s22, 1
      %p308 = scmp.lt.s32.totalorder %s305, 7
      %s309 = scalar_select %p308, %s305, 7
      %s310 = smul.addr %s307, 8
      %s311 = sadd.s32 %s309, %s310
      %s312 = smul.addr %s311, 4
      %s313 = scalar_lea.vmem %s6, %s312
      %s314 = smul.u32 8, %s23
      %v316 = vld [vmem:[%s293] sm:$0xff]
      %v317 = vld [vmem:[%s293 + $0x8] sm:$0xff]
      %v318 = vld [vmem:[%s293 + $0x10] sm:$0xff]
      %v319 = vld [vmem:[%s293 + $0x18] sm:$0xff]
      %v320 = vld [vmem:[%s293 + $0x20] sm:$0xff]
      %v321 = vld [vmem:[%s293 + $0x28] sm:$0xff]
      %v322 = vld [vmem:[%s293 + $0x30] sm:$0xff]
      %v323 = vld [vmem:[%s293 + $0x38] sm:$0xff]
      %v324 = vpack.c.bf16 %v317, %v316
      %v325 = vpack.c.bf16 %v319, %v318
      %v326 = vpack.c.bf16 %v321, %v320
      %v327 = vpack.c.bf16 %v323, %v322
      %v328 = vld [vmem:[%s1] sm:$0xf]
      %v329 = vld [vmem:[%s1 + $0x4] sm:$0xf]
      %v330 = vld [vmem:[%s1 + $0x8] sm:$0xf]
      %v331 = vld [vmem:[%s1 + $0xc] sm:$0xf]
      %v332 = vld [vmem:[%s2] sm:$0x1]
      %v334 = vperm.slane %v332, 0
      %v340 = vunpack.c.l.b16 %v328
      %v341 = vunpack.c.l.b16 %v329
      %v342 = vunpack.c.l.b16 %v330
      %v343 = vunpack.c.l.b16 %v331
      %v344 = vpack.c.b16 %v341, %v340
      %v345 = vpack.c.b16 %v343, %v342
      %vm348 = vcmask 261120
      %v350 = vsel %vm348, %v324, 0
      %v353 = vsel %vm348, %v325, 0
      %v356 = vsel %vm348, %v326, 0
      %v359 = vsel %vm348, %v327, 0
      %361 = vmatpush.bf16.msra.mxu0 0
      %362 = vmatpush.bf16.msra.mxu0 0
      %363 = vmatpush.bf16.msra.mxu0 0
      %364 = vmatpush.bf16.msra.mxu0 0
      %365 = vmatpush.bf16.msra.mxu0 0
      %366 = vmatpush.bf16.msra.mxu0 0
      %367 = vmatpush.bf16.msra.mxu0 %v345
      %368 = vmatpush.bf16.msra.mxu0 %v344
      %369 = vmatmul.bf16.gmra.mxu0 %v350
      %v370 = vpop.f32.mrf.mxu0
      %v371 = vadd.f32 %v334, %v370
      %v372 = vpop.f32.mrf.mxu0
      %v373 = vadd.f32 %v334, %v372
      %374 = vmatmul.bf16.gmra.mxu0 %v353
      %v375 = vpop.f32.mrf.mxu0
      %v376 = vadd.f32 %v334, %v375
      %v377 = vpop.f32.mrf.mxu0
      %v378 = vadd.f32 %v334, %v377
      %379 = vmatmul.bf16.gmra.mxu0 %v356
      %v380 = vpop.f32.mrf.mxu0
      %v381 = vadd.f32 %v334, %v380
      %v382 = vpop.f32.mrf.mxu0
      %v383 = vadd.f32 %v334, %v382
      %384 = vmatmul.bf16.gmra.mxu0 %v359
      %v385 = vpop.f32.mrf.mxu0
      %v386 = vadd.f32 %v334, %v385
      %v387 = vpop.f32.mrf.mxu0
      %v388 = vadd.f32 %v334, %v387
      %389 = vdwg.mxu0
      %v390 = vld [vmem:[%s3] sm:$0xf]
      %v391 = vld [vmem:[%s3 + $0x4] sm:$0xf]
      %v392 = vld [vmem:[%s3 + $0x8] sm:$0xf]
      %v393 = vld [vmem:[%s3 + $0xc] sm:$0xf]
      %v394 = vld [vmem:[%s4] sm:$0x1]
      %v396 = vperm.slane %v394, 0
      %v402 = vunpack.c.l.b16 %v390
      %v403 = vunpack.c.l.b16 %v391
      %v404 = vunpack.c.l.b16 %v392
      %v405 = vunpack.c.l.b16 %v393
      %v406 = vpack.c.b16 %v403, %v402
      %v407 = vpack.c.b16 %v405, %v404
      %410 = vmatpush.bf16.msra.mxu0 0
      %411 = vmatpush.bf16.msra.mxu0 0
      %412 = vmatpush.bf16.msra.mxu0 0
      %413 = vmatpush.bf16.msra.mxu0 0
      %414 = vmatpush.bf16.msra.mxu0 0
      %415 = vmatpush.bf16.msra.mxu0 0
      %416 = vmatpush.bf16.msra.mxu0 %v407
      %417 = vmatpush.bf16.msra.mxu0 %v406
      %418 = vmatmul.bf16.gmra.mxu0 %v350
      %v419 = vpop.f32.mrf.mxu0
      %v420 = vadd.f32 %v396, %v419
      %v421 = vpop.f32.mrf.mxu0
      %v422 = vadd.f32 %v396, %v421
      %423 = vmatmul.bf16.gmra.mxu0 %v353
      %v424 = vpop.f32.mrf.mxu0
      %v425 = vadd.f32 %v396, %v424
      %v426 = vpop.f32.mrf.mxu0
      %v427 = vadd.f32 %v396, %v426
      %428 = vmatmul.bf16.gmra.mxu0 %v356
      %v429 = vpop.f32.mrf.mxu0
      %v430 = vadd.f32 %v396, %v429
      %v431 = vpop.f32.mrf.mxu0
      %v432 = vadd.f32 %v396, %v431
      %433 = vmatmul.bf16.gmra.mxu0 %v359
      %v434 = vpop.f32.mrf.mxu0
      %v435 = vadd.f32 %v396, %v434
      %v436 = vpop.f32.mrf.mxu0
      %v437 = vadd.f32 %v396, %v436
      %438 = vdwg.mxu0
      %v439 = vpack.c.bf16 %v371, %v371
      %v440 = vpack.c.bf16 %v373, %v373
      %v441 = vpack.c.bf16 %v376, %v376
      %v442 = vpack.c.bf16 %v378, %v378
      %v443 = vpack.c.bf16 %v381, %v381
      %v444 = vpack.c.bf16 %v383, %v383
      %v445 = vpack.c.bf16 %v386, %v386
      %v446 = vpack.c.bf16 %v388, %v388
      %vm447 = vcmask 27648
      %448 = vst.msk [vmem:[%s303] sm:$0xf] %vm447, %v439
      %449 = vst.msk [vmem:[%s303 + $0x4] sm:$0xf] %vm447, %v440
      %450 = vst.msk [vmem:[%s303 + $0x8] sm:$0xf] %vm447, %v441
      %451 = vst.msk [vmem:[%s303 + $0xc] sm:$0xf] %vm447, %v442
      %452 = vst.msk [vmem:[%s303 + $0x10] sm:$0xf] %vm447, %v443
      %453 = vst.msk [vmem:[%s303 + $0x14] sm:$0xf] %vm447, %v444
      %454 = vst.msk [vmem:[%s303 + $0x18] sm:$0xf] %vm447, %v445
      %455 = vst.msk [vmem:[%s303 + $0x1c] sm:$0xf] %vm447, %v446
      %v456 = vpack.c.bf16 %v420, %v420
      %v457 = vpack.c.bf16 %v422, %v422
      %v458 = vpack.c.bf16 %v425, %v425
      %v459 = vpack.c.bf16 %v427, %v427
      %v460 = vpack.c.bf16 %v430, %v430
      %v461 = vpack.c.bf16 %v432, %v432
      %v462 = vpack.c.bf16 %v435, %v435
      %v463 = vpack.c.bf16 %v437, %v437
      %vm464 = vcmask 257024
      %465 = vst.msk [vmem:[%s313] sm:$0xf] %vm464, %v456
      %466 = vst.msk [vmem:[%s313 + $0x4] sm:$0xf] %vm464, %v457
      %467 = vst.msk [vmem:[%s313 + $0x8] sm:$0xf] %vm464, %v458
      %468 = vst.msk [vmem:[%s313 + $0xc] sm:$0xf] %vm464, %v459
      %469 = vst.msk [vmem:[%s313 + $0x10] sm:$0xf] %vm464, %v460
      %470 = vst.msk [vmem:[%s313 + $0x14] sm:$0xf] %vm464, %v461
      %471 = vst.msk [vmem:[%s313 + $0x18] sm:$0xf] %vm464, %v462
      %472 = vst.msk [vmem:[%s313 + $0x1c] sm:$0xf] %vm464, %v463
      %s473 = smul.u32 8, %s23
      %p474 = scmp.lt.s32.totalorder %s22, 1
      %s475 = scalar_select %p474, %s22, 1
      %p476 = scmp.lt.s32.totalorder %s473, 7
      %s477 = scalar_select %p476, %s473, 7
      %s478 = smul.addr %s475, 8
      %s479 = sadd.s32 %s477, %s478
      %s480 = smul.addr %s479, 4
      %s481 = scalar_lea.vmem %s5, %s480
      %s482 = smul.u32 8, %s23
      %p483 = scmp.lt.s32.totalorder %s22, 1
      %s484 = scalar_select %p483, %s22, 1
      %p485 = scmp.lt.s32.totalorder %s482, 7
      %s486 = scalar_select %p485, %s482, 7
      %s487 = smul.addr %s484, 8
      %s488 = sadd.s32 %s486, %s487
      %s489 = smul.addr %s488, 4
      %s490 = scalar_lea.vmem %s6, %s489
      // Predicated region
      $region41: #{tpu_custom_call.1} parent=39 // pred_check
        %p491 = pneg %p162
      $region42: #{tpu_custom_call.1} parent=39 // pred_check_branch
        %493 = sbr.rel (%p491) target = $region44
      $region43: #{tpu_custom_call.1} parent=39 // pred_region
        %s494 = smul.u32 8, %s23
      $region44: #{tpu_custom_call.1} parent=39 // pred_fallthru
        _
      // Predicated region
      $region45: #{tpu_custom_call.1} parent=39 // pred_check
        %p495 = pneg %p190
      $region46: #{tpu_custom_call.1} parent=39 // pred_check_branch
        %497 = sbr.rel (%p495) target = $region48
      $region47: #{tpu_custom_call.1} parent=39 // pred_region
        %s498 = smul.u32 8, %s23
      $region48: #{tpu_custom_call.1} parent=39 // pred_fallthru
        _
    $region40: #{tpu_custom_call.1} parent=5 // pred_fallthru
      _
    %p499 = scmp.le.s32.totalorder 2, %s13
    // Predicated region
    $region49: #{tpu_custom_call.1} parent=5 // pred_check
      %p500 = pneg %p499
    $region50: #{tpu_custom_call.1} parent=5 // pred_check_branch
      %502 = sbr.rel (%p500) target = $region52
    $region51: #{tpu_custom_call.1} parent=5 // pred_region
      %s503 = ssub.s32 %s13, 2
      // Predicated region
      $region53: #{tpu_custom_call.1} parent=51 // pred_check
        %p504 = pneg %p168
      $region54: #{tpu_custom_call.1} parent=51 // pred_check_branch
        %506 = sbr.rel (%p504) target = $region56
      $region55: #{tpu_custom_call.1} parent=51 // pred_region
        %s507 = smul.u32 8, %s25
        %p508 = scmp.lt.s32.totalorder %s24, 1
        %s509 = scalar_select %p508, %s24, 1
        %p510 = scmp.lt.s32.totalorder %s507, 7
        %s511 = scalar_select %p510, %s507, 7
        %s512 = smul.addr %s509, 8
        %s513 = sadd.s32 %s511, %s512
        %s514 = smul.addr %s513, 4
        %s515 = scalar_lea.vmem %s5, %s514
      $region56: #{tpu_custom_call.1} parent=51 // pred_fallthru
        _
      // Predicated region
      $region57: #{tpu_custom_call.1} parent=51 // pred_check
        %p516 = pneg %p196
      $region58: #{tpu_custom_call.1} parent=51 // pred_check_branch
        %518 = sbr.rel (%p516) target = $region60
      $region59: #{tpu_custom_call.1} parent=51 // pred_region
        %s519 = smul.u32 8, %s25
        %p520 = scmp.lt.s32.totalorder %s24, 1
        %s521 = scalar_select %p520, %s24, 1
        %p522 = scmp.lt.s32.totalorder %s519, 7
        %s523 = scalar_select %p522, %s519, 7
        %s524 = smul.addr %s521, 8
        %s525 = sadd.s32 %s523, %s524
        %s526 = smul.addr %s525, 4
        %s527 = scalar_lea.vmem %s6, %s526
      $region60: #{tpu_custom_call.1} parent=51 // pred_fallthru
        _
    $region52: #{tpu_custom_call.1} parent=5 // pred_fallthru
      _
  $region6: #{tpu_custom_call.1} parent=0 // loop_footer
    %s17 = sadd.s32 1, %s13
  $region7: #{tpu_custom_call.1} parent=0 // loop_footer_branch
    %12 = sbr.rel target = $region3
  $region8: #{tpu_custom_call.1} parent=0 // loop_exit
    _

</llo_original>
